<compile_context>
chip_gen: v5e
topology: v5e:2x2
jax: 0.10.0
libtpu: 0.0.40
codegen_flags: <defaults>
</compile_context>

<pallas_src>
import jax
import jax.numpy as jnp
from jax.experimental import pallas as pl
from jax.experimental.pallas import tpu as pltpu


def encoder_kernel(x_ref, pose_ref, img1_ref, img2_ref, img3_ref,
                   w1_ref, w2_ref, wcp_ref, wc1_ref, wc2_ref, wc3_ref,
                   whh_ref, whc_ref, b_ref, out_ref):
    f32 = jnp.float32
    fc = w1_ref.shape[1]
    lat2 = whh_ref.shape[1]
    inv_hw = 1.0 / img1_ref.shape[-1]

    # Sublane-packed biases: each row starts at lane offset 0 (no lane shuffle).
    b1 = b_ref[0:1, :fc]
    b2 = b_ref[1:2, :fc]
    bc = b_ref[2:3, :fc]
    bh = b_ref[3:4, :lat2]

    # ---- main branch: h = relu(fc2(relu(fc1(x)))) ----
    h = jnp.maximum(
        jnp.dot(x_ref[...], w1_ref[...], preferred_element_type=f32) + b1, 0.0)
    h = jnp.maximum(
        jnp.dot(h, w2_ref[...], preferred_element_type=f32) + b2, 0.0)

    # ---- condition branch ----
    # Per-channel spatial mean on the VPU/XLU (these slots are otherwise idle),
    # then 4 tiny partial dots == concat((pose, p1, p2, p3), 1) @ w_c.
    p1 = jnp.sum(img1_ref[...], axis=-1) * inv_hw        # (B, C)
    p2 = jnp.sum(img2_ref[...], axis=-1) * inv_hw
    p3 = jnp.sum(img3_ref[...], axis=-1) * inv_hw
    c = (jnp.dot(pose_ref[...], wcp_ref[...], preferred_element_type=f32)
         + jnp.dot(p1, wc1_ref[...], preferred_element_type=f32)
         + jnp.dot(p2, wc2_ref[...], preferred_element_type=f32)
         + jnp.dot(p3, wc3_ref[...], preferred_element_type=f32)
         + bc)
    c = jnp.maximum(c, 0.0)

    # ---- fused heads: out[:, :latent] = mu, out[:, latent:] = logvar ----
    # (split-by-source partial matmuls == concat((h, c), 1) @ [W_mu | W_logvar])
    out_ref[...] = (
        jnp.dot(h, whh_ref[...], preferred_element_type=f32)
        + jnp.dot(c, whc_ref[...], preferred_element_type=f32)
        + bh
    )


def pack_params(params, pose_dim, img_c):
    """One-time parameter prep: cond-weight split, head fusion, bias sublane-pack."""
    fc = params["b1"].shape[0]
    latent = params["b_mu"].shape[0]

    # condition weight split by source (pose, img, img_crop, img_zoom)
    w_c = params["w_c"]                                   # (pose_dim + 3C, fc)
    wcp = w_c[:pose_dim]
    wc1 = w_c[pose_dim:pose_dim + img_c]
    wc2 = w_c[pose_dim + img_c:pose_dim + 2 * img_c]
    wc3 = w_c[pose_dim + 2 * img_c:pose_dim + 3 * img_c]

    # fused mu|logvar heads: (fc, 2*latent) each for the h-part and c-part
    w_mu, w_lv = params["w_mu"], params["w_logvar"]
    whh = jnp.concatenate([w_mu[:fc], w_lv[:fc]], axis=1)
    whc = jnp.concatenate([w_mu[fc:], w_lv[fc:]], axis=1)

    # sublane-packed biases: (4, max(fc, 2*latent)); rows = b1, b2, b_c, b_head
    width = max(fc, 2 * latent)
    pad = lambda v: jnp.pad(v, (0, width - v.shape[0]))
    b_head = jnp.concatenate([params["b_mu"], params["b_logvar"]])
    b_pack = jnp.stack([pad(params["b1"]), pad(params["b2"]),
                        pad(params["b_c"]), pad(b_head)])

    return {"w1": params["w1"], "w2": params["w2"],
            "wcp": wcp, "wc1": wc1, "wc2": wc2, "wc3": wc3,
            "whh": whh, "whc": whc, "b": b_pack}


@jax.jit
def encoder_forward(x, pose, img, img_crop, img_zoom, packed):
    """Wrapper: free contiguous reshapes + a single gridless pallas_call."""
    B = x.shape[0]
    C, H, W = img.shape[1], img.shape[2], img.shape[3]
    HW = H * W
    fc = packed["w1"].shape[1]
    lat2 = packed["whh"].shape[1]

    # Contiguous reshapes only — no wrapper-side concat / HBM roundtrip.
    i1 = img.reshape(B, C, HW)
    i2 = img_crop.reshape(B, C, HW)
    i3 = img_zoom.reshape(B, C, HW)

    args = (x, pose, i1, i2, i3,
            packed["w1"], packed["w2"],
            packed["wcp"], packed["wc1"], packed["wc2"], packed["wc3"],
            packed["whh"], packed["whc"], packed["b"])

    flops = 2 * B * (x.shape[1] * fc + fc * fc + pose.shape[1] * fc
                     + 3 * C * fc + 2 * fc * lat2) + 3 * B * C * HW
    bytes_accessed = (sum(int(a.size) * a.dtype.itemsize for a in args)
                      + B * lat2 * 4)

    vmem_spec = pl.BlockSpec(memory_space=pltpu.MemorySpace.VMEM)

    out = pl.pallas_call(
        encoder_kernel,
        out_shape=jax.ShapeDtypeStruct((B, lat2), jnp.float32),
        # Gridless: whole problem (<100 KiB) lives in VMEM for one invocation.
        # For large batches, add a batch grid axis marked "parallel"
        # (M-tile 128 on v5e, 256 on v6e/v7x) via PrefetchScalarGridSpec.
        in_specs=[vmem_spec] * len(args),
        out_specs=vmem_spec,
        cost_estimate=pl.CostEstimate(flops=flops, transcendentals=0,
                                      bytes_accessed=bytes_accessed),
    )(*args)

    lat = lat2 // 2
    return out[:, :lat], out[:, lat:]


def init_params(key, sd_dim, fc_dim, latent_dim, pose_dim, img_c):
    ks = jax.random.split(key, 10)
    s = 0.02
    cond_in = pose_dim + 3 * img_c
    return {
        # all weights stored (in, out) == PyTorch weight.T
        "w1": jax.random.normal(ks[0], (sd_dim, fc_dim), jnp.float32) * s,
        "b1": jax.random.normal(ks[1], (fc_dim,), jnp.float32) * s,
        "w2": jax.random.normal(ks[2], (fc_dim, fc_dim), jnp.float32) * s,
        "b2": jax.random.normal(ks[3], (fc_dim,), jnp.float32) * s,
        "w_c": jax.random.normal(ks[4], (cond_in, fc_dim), jnp.float32) * s,
        "b_c": jax.random.normal(ks[5], (fc_dim,), jnp.float32) * s,
        "w_mu": jax.random.normal(ks[6], (2 * fc_dim, latent_dim), jnp.float32) * s,
        "b_mu": jax.random.normal(ks[7], (latent_dim,), jnp.float32) * s,
        "w_logvar": jax.random.normal(ks[8], (2 * fc_dim, latent_dim), jnp.float32) * s,
        "b_logvar": jax.random.normal(ks[9], (latent_dim,), jnp.float32) * s,
    }


def reference_forward(x, pose, img, img_crop, img_zoom, params):
    """Pure-JAX reference (mirrors the PyTorch forward + stand-in cond encoder)."""
    h = jax.nn.relu(x @ params["w1"] + params["b1"])
    h = jax.nn.relu(h @ params["w2"] + params["b2"])
    pooled = [t.mean(axis=(2, 3)) for t in (img, img_crop, img_zoom)]
    cond_in = jnp.concatenate([pose] + pooled, axis=1)
    c = jax.nn.relu(cond_in @ params["w_c"] + params["b_c"])
    cat = jnp.concatenate([h, c], axis=1)
    mu = cat @ params["w_mu"] + params["b_mu"]
    lv = cat @ params["w_logvar"] + params["b_logvar"]
    return mu, lv


if __name__ == "__main__":
    # small cfg: sd_dim=32, fc_dim=32, latent_dim=16, pose_dim=12, images (B,4,16,16)
    B, SD, FC, LAT, POSE, C, H, W = 8, 32, 32, 16, 12, 4, 16, 16

    key = jax.random.PRNGKey(0)
    kx, kp, k1, k2, k3, kw = jax.random.split(key, 6)
    x = jax.random.normal(kx, (B, SD), jnp.float32)
    pose = jax.random.normal(kp, (B, POSE), jnp.float32)
    img = jax.random.normal(k1, (B, C, H, W), jnp.float32)
    img_crop = jax.random.normal(k2, (B, C, H, W), jnp.float32)
    img_zoom = jax.random.normal(k3, (B, C, H, W), jnp.float32)

    params = init_params(kw, SD, FC, LAT, POSE, C)
    packed = pack_params(params, POSE, C)

    mu, logvar = encoder_forward(x, pose, img, img_crop, img_zoom, packed)
    jax.block_until_ready((mu, logvar))

    mu_ref, lv_ref = reference_forward(x, pose, img, img_crop, img_zoom, params)
    assert mu.shape == (B, LAT) and logvar.shape == (B, LAT)
    assert jnp.allclose(mu, mu_ref, atol=1e-4, rtol=1e-4)
    assert jnp.allclose(logvar, lv_ref, atol=1e-4, rtol=1e-4)

    print("KERNEL_OK")
</pallas_src>

<mosaic_0001>
module attributes {stable_mosaic.version = 11 : i64} {
  func.func @encoder_kernel(%arg0: memref<8x32xf32, #tpu.memory_space<vmem>>, %arg1: memref<8x12xf32, #tpu.memory_space<vmem>>, %arg2: memref<8x4x256xf32, #tpu.memory_space<vmem>>, %arg3: memref<8x4x256xf32, #tpu.memory_space<vmem>>, %arg4: memref<8x4x256xf32, #tpu.memory_space<vmem>>, %arg5: memref<32x32xf32, #tpu.memory_space<vmem>>, %arg6: memref<32x32xf32, #tpu.memory_space<vmem>>, %arg7: memref<12x32xf32, #tpu.memory_space<vmem>>, %arg8: memref<4x32xf32, #tpu.memory_space<vmem>>, %arg9: memref<4x32xf32, #tpu.memory_space<vmem>>, %arg10: memref<4x32xf32, #tpu.memory_space<vmem>>, %arg11: memref<32x32xf32, #tpu.memory_space<vmem>>, %arg12: memref<32x32xf32, #tpu.memory_space<vmem>>, %arg13: memref<4x32xf32, #tpu.memory_space<vmem>>, %arg14: memref<8x32xf32, #tpu.memory_space<vmem>>) attributes {dimension_semantics = [], scalar_prefetch = 0 : i64, scratch_operands = 0 : i64, tpu.core_type = #tpu.core_type<tc>} {
    %c0 = arith.constant 0 : index
    %c0_0 = arith.constant 0 : index
    %0 = vector.load %arg13[%c0, %c0_0] : memref<4x32xf32, #tpu.memory_space<vmem>>, vector<1x32xf32>
    %c1 = arith.constant 1 : index
    %c0_1 = arith.constant 0 : index
    %1 = vector.load %arg13[%c1, %c0_1] : memref<4x32xf32, #tpu.memory_space<vmem>>, vector<1x32xf32>
    %c2 = arith.constant 2 : index
    %c0_2 = arith.constant 0 : index
    %2 = vector.load %arg13[%c2, %c0_2] : memref<4x32xf32, #tpu.memory_space<vmem>>, vector<1x32xf32>
    %c3 = arith.constant 3 : index
    %c0_3 = arith.constant 0 : index
    %3 = vector.load %arg13[%c3, %c0_3] : memref<4x32xf32, #tpu.memory_space<vmem>>, vector<1x32xf32>
    %c0_4 = arith.constant 0 : index
    %c0_5 = arith.constant 0 : index
    %4 = vector.load %arg0[%c0_4, %c0_5] : memref<8x32xf32, #tpu.memory_space<vmem>>, vector<8x32xf32>
    %c0_6 = arith.constant 0 : index
    %c0_7 = arith.constant 0 : index
    %5 = vector.load %arg5[%c0_6, %c0_7] : memref<32x32xf32, #tpu.memory_space<vmem>>, vector<32x32xf32>
    %cst = arith.constant dense<0.000000e+00> : vector<8x32xf32>
    %6 = tpu.matmul %4, %5, %cst {dimension_numbers = #tpu.dot_dimension_numbers<[1], [0], [0], [1], [0, 0, 1, 1], [], []>} : vector<8x32xf32>, vector<32x32xf32>, vector<8x32xf32> -> vector<8x32xf32>
    %7 = vector.broadcast %0 : vector<1x32xf32> to vector<8x32xf32>
    %8 = arith.addf %6, %7 : vector<8x32xf32>
    %cst_8 = arith.constant 0.000000e+00 : f32
    %9 = vector.broadcast %cst_8 : f32 to vector<8x32xf32>
    %10 = arith.maximumf %8, %9 : vector<8x32xf32>
    %c0_9 = arith.constant 0 : index
    %c0_10 = arith.constant 0 : index
    %11 = vector.load %arg6[%c0_9, %c0_10] : memref<32x32xf32, #tpu.memory_space<vmem>>, vector<32x32xf32>
    %cst_11 = arith.constant dense<0.000000e+00> : vector<8x32xf32>
    %12 = tpu.matmul %10, %11, %cst_11 {dimension_numbers = #tpu.dot_dimension_numbers<[1], [0], [0], [1], [0, 0, 1, 1], [], []>} : vector<8x32xf32>, vector<32x32xf32>, vector<8x32xf32> -> vector<8x32xf32>
    %13 = vector.broadcast %1 : vector<1x32xf32> to vector<8x32xf32>
    %14 = arith.addf %12, %13 : vector<8x32xf32>
    %cst_12 = arith.constant 0.000000e+00 : f32
    %15 = vector.broadcast %cst_12 : f32 to vector<8x32xf32>
    %16 = arith.maximumf %14, %15 : vector<8x32xf32>
    %c0_13 = arith.constant 0 : index
    %c0_14 = arith.constant 0 : index
    %c0_15 = arith.constant 0 : index
    %17 = vector.load %arg2[%c0_13, %c0_14, %c0_15] : memref<8x4x256xf32, #tpu.memory_space<vmem>>, vector<8x4x256xf32>
    %cst_16 = arith.constant dense<0.000000e+00> : vector<8x4xf32>
    %18 = vector.multi_reduction <add>, %17, %cst_16 [2] : vector<8x4x256xf32> to vector<8x4xf32>
    %cst_17 = arith.constant 3.906250e-03 : f32
    %19 = vector.broadcast %cst_17 : f32 to vector<8x4xf32>
    %20 = arith.mulf %18, %19 : vector<8x4xf32>
    %c0_18 = arith.constant 0 : index
    %c0_19 = arith.constant 0 : index
    %c0_20 = arith.constant 0 : index
    %21 = vector.load %arg3[%c0_18, %c0_19, %c0_20] : memref<8x4x256xf32, #tpu.memory_space<vmem>>, vector<8x4x256xf32>
    %cst_21 = arith.constant dense<0.000000e+00> : vector<8x4xf32>
    %22 = vector.multi_reduction <add>, %21, %cst_21 [2] : vector<8x4x256xf32> to vector<8x4xf32>
    %cst_22 = arith.constant 3.906250e-03 : f32
    %23 = vector.broadcast %cst_22 : f32 to vector<8x4xf32>
    %24 = arith.mulf %22, %23 : vector<8x4xf32>
    %c0_23 = arith.constant 0 : index
    %c0_24 = arith.constant 0 : index
    %c0_25 = arith.constant 0 : index
    %25 = vector.load %arg4[%c0_23, %c0_24, %c0_25] : memref<8x4x256xf32, #tpu.memory_space<vmem>>, vector<8x4x256xf32>
    %cst_26 = arith.constant dense<0.000000e+00> : vector<8x4xf32>
    %26 = vector.multi_reduction <add>, %25, %cst_26 [2] : vector<8x4x256xf32> to vector<8x4xf32>
    %cst_27 = arith.constant 3.906250e-03 : f32
    %27 = vector.broadcast %cst_27 : f32 to vector<8x4xf32>
    %28 = arith.mulf %26, %27 : vector<8x4xf32>
    %c0_28 = arith.constant 0 : index
    %c0_29 = arith.constant 0 : index
    %29 = vector.load %arg1[%c0_28, %c0_29] : memref<8x12xf32, #tpu.memory_space<vmem>>, vector<8x12xf32>
    %c0_30 = arith.constant 0 : index
    %c0_31 = arith.constant 0 : index
    %30 = vector.load %arg7[%c0_30, %c0_31] : memref<12x32xf32, #tpu.memory_space<vmem>>, vector<12x32xf32>
    %cst_32 = arith.constant dense<0.000000e+00> : vector<8x32xf32>
    %31 = tpu.matmul %29, %30, %cst_32 {dimension_numbers = #tpu.dot_dimension_numbers<[1], [0], [0], [1], [0, 0, 1, 1], [], []>} : vector<8x12xf32>, vector<12x32xf32>, vector<8x32xf32> -> vector<8x32xf32>
    %c0_33 = arith.constant 0 : index
    %c0_34 = arith.constant 0 : index
    %32 = vector.load %arg8[%c0_33, %c0_34] : memref<4x32xf32, #tpu.memory_space<vmem>>, vector<4x32xf32>
    %cst_35 = arith.constant dense<0.000000e+00> : vector<8x32xf32>
    %33 = tpu.matmul %20, %32, %cst_35 {dimension_numbers = #tpu.dot_dimension_numbers<[1], [0], [0], [1], [0, 0, 1, 1], [], []>} : vector<8x4xf32>, vector<4x32xf32>, vector<8x32xf32> -> vector<8x32xf32>
    %34 = arith.addf %31, %33 : vector<8x32xf32>
    %c0_36 = arith.constant 0 : index
    %c0_37 = arith.constant 0 : index
    %35 = vector.load %arg9[%c0_36, %c0_37] : memref<4x32xf32, #tpu.memory_space<vmem>>, vector<4x32xf32>
    %cst_38 = arith.constant dense<0.000000e+00> : vector<8x32xf32>
    %36 = tpu.matmul %24, %35, %cst_38 {dimension_numbers = #tpu.dot_dimension_numbers<[1], [0], [0], [1], [0, 0, 1, 1], [], []>} : vector<8x4xf32>, vector<4x32xf32>, vector<8x32xf32> -> vector<8x32xf32>
    %37 = arith.addf %34, %36 : vector<8x32xf32>
    %c0_39 = arith.constant 0 : index
    %c0_40 = arith.constant 0 : index
    %38 = vector.load %arg10[%c0_39, %c0_40] : memref<4x32xf32, #tpu.memory_space<vmem>>, vector<4x32xf32>
    %cst_41 = arith.constant dense<0.000000e+00> : vector<8x32xf32>
    %39 = tpu.matmul %28, %38, %cst_41 {dimension_numbers = #tpu.dot_dimension_numbers<[1], [0], [0], [1], [0, 0, 1, 1], [], []>} : vector<8x4xf32>, vector<4x32xf32>, vector<8x32xf32> -> vector<8x32xf32>
    %40 = arith.addf %37, %39 : vector<8x32xf32>
    %41 = vector.broadcast %2 : vector<1x32xf32> to vector<8x32xf32>
    %42 = arith.addf %40, %41 : vector<8x32xf32>
    %cst_42 = arith.constant 0.000000e+00 : f32
    %43 = vector.broadcast %cst_42 : f32 to vector<8x32xf32>
    %44 = arith.maximumf %42, %43 : vector<8x32xf32>
    %c0_43 = arith.constant 0 : index
    %c0_44 = arith.constant 0 : index
    %45 = vector.load %arg11[%c0_43, %c0_44] : memref<32x32xf32, #tpu.memory_space<vmem>>, vector<32x32xf32>
    %cst_45 = arith.constant dense<0.000000e+00> : vector<8x32xf32>
    %46 = tpu.matmul %16, %45, %cst_45 {dimension_numbers = #tpu.dot_dimension_numbers<[1], [0], [0], [1], [0, 0, 1, 1], [], []>} : vector<8x32xf32>, vector<32x32xf32>, vector<8x32xf32> -> vector<8x32xf32>
    %c0_46 = arith.constant 0 : index
    %c0_47 = arith.constant 0 : index
    %47 = vector.load %arg12[%c0_46, %c0_47] : memref<32x32xf32, #tpu.memory_space<vmem>>, vector<32x32xf32>
    %cst_48 = arith.constant dense<0.000000e+00> : vector<8x32xf32>
    %48 = tpu.matmul %44, %47, %cst_48 {dimension_numbers = #tpu.dot_dimension_numbers<[1], [0], [0], [1], [0, 0, 1, 1], [], []>} : vector<8x32xf32>, vector<32x32xf32>, vector<8x32xf32> -> vector<8x32xf32>
    %49 = arith.addf %46, %48 : vector<8x32xf32>
    %50 = vector.broadcast %3 : vector<1x32xf32> to vector<8x32xf32>
    %51 = arith.addf %49, %50 : vector<8x32xf32>
    %c0_49 = arith.constant 0 : index
    %c0_50 = arith.constant 0 : index
    %52 = vector.load %arg14[%c0_49, %c0_50] : memref<8x32xf32, #tpu.memory_space<vmem>>, vector<8x32xf32>
    tpu.vector_store %arg14[%c0_49, %c0_50], %51 {strides = array<i32>} : memref<8x32xf32, #tpu.memory_space<vmem>>, vector<8x32xf32>,
    return
  }
}

</mosaic_0001>

<llo_original>
// kernel: encoder_forward.1
$region0: #{encoder_forward.1}
  #allocation0 [shape = 'u32[]', space=smem, size = 0x4, offset = 0x4, fixed_abs, tag = 'smem constant byte address 0x4 - core index']
  #allocation1 [shape = 'u32[72,128]{1,0:T(1,128)}', space=vmem, size = 0x9000, scoped, tag = 'internal scratch']
  %s0 = inlined_call_operand.vmem [shape: f32[8,32], index: 0, kind: input, shape index: {}]
  %s1 = inlined_call_operand.vmem [shape: f32[8,12], index: 1, kind: input, shape index: {}]
  %s2 = inlined_call_operand.vmem [shape: f32[8,4,256], index: 2, kind: input, shape index: {}]
  %s3 = inlined_call_operand.vmem [shape: f32[8,4,256], index: 3, kind: input, shape index: {}]
  %s4 = inlined_call_operand.vmem [shape: f32[8,4,256], index: 4, kind: input, shape index: {}]
  %s5 = inlined_call_operand.vmem [shape: f32[32,32], index: 5, kind: input, shape index: {}]
  %s6 = inlined_call_operand.vmem [shape: f32[32,32], index: 6, kind: input, shape index: {}]
  %s7 = inlined_call_operand.vmem [shape: f32[12,32], index: 7, kind: input, shape index: {}]
  %s8 = inlined_call_operand.vmem [shape: f32[4,32], index: 8, kind: input, shape index: {}]
  %s9 = inlined_call_operand.vmem [shape: f32[4,32], index: 9, kind: input, shape index: {}]
  %s10 = inlined_call_operand.vmem [shape: f32[4,32], index: 10, kind: input, shape index: {}]
  %s11 = inlined_call_operand.vmem [shape: f32[32,32], index: 11, kind: input, shape index: {}]
  %s12 = inlined_call_operand.vmem [shape: f32[32,32], index: 12, kind: input, shape index: {}]
  %s13 = inlined_call_operand.vmem [shape: f32[4,32], index: 13, kind: input, shape index: {}]
  %s14 = inlined_call_operand.vmem [shape: f32[8,32], index: 14, kind: output, shape index: {}]
  %s15 = sld [smem:[#allocation0]]
  $region66: #{encoder_forward.1} parent=0
    _
  %s17 = ssub.s32 1, %s15
  %s18 = scalar_select 0, %s17, %s15
  // Predicated region
  $region2: #{encoder_forward.1} parent=0 // pred_check
    _
  $region3: #{encoder_forward.1} parent=0 // pred_check_branch
    %20 = sbr.rel (0) target = $region5
  $region4: #{encoder_forward.1} parent=0 // pred_region
    _
  $region5: #{encoder_forward.1} parent=0 // pred_fallthru
    _
  // Predicated region
  $region6: #{encoder_forward.1} parent=0 // pred_check
    _
  $region7: #{encoder_forward.1} parent=0 // pred_check_branch
    %22 = sbr.rel (0) target = $region9
  $region8: #{encoder_forward.1} parent=0 // pred_region
    _
  $region9: #{encoder_forward.1} parent=0 // pred_fallthru
    _
  // Predicated region
  $region10: #{encoder_forward.1} parent=0 // pred_check
    _
  $region11: #{encoder_forward.1} parent=0 // pred_check_branch
    %24 = sbr.rel (0) target = $region13
  $region12: #{encoder_forward.1} parent=0 // pred_region
    _
  $region13: #{encoder_forward.1} parent=0 // pred_fallthru
    _
  // Predicated region
  $region14: #{encoder_forward.1} parent=0 // pred_check
    _
  $region15: #{encoder_forward.1} parent=0 // pred_check_branch
    %26 = sbr.rel (0) target = $region17
  $region16: #{encoder_forward.1} parent=0 // pred_region
    _
  $region17: #{encoder_forward.1} parent=0 // pred_fallthru
    _
  // Predicated region
  $region18: #{encoder_forward.1} parent=0 // pred_check
    _
  $region19: #{encoder_forward.1} parent=0 // pred_check_branch
    %28 = sbr.rel (0) target = $region21
  $region20: #{encoder_forward.1} parent=0 // pred_region
    _
  $region21: #{encoder_forward.1} parent=0 // pred_fallthru
    _
  // Predicated region
  $region22: #{encoder_forward.1} parent=0 // pred_check
    _
  $region23: #{encoder_forward.1} parent=0 // pred_check_branch
    %30 = sbr.rel (0) target = $region25
  $region24: #{encoder_forward.1} parent=0 // pred_region
    _
  $region25: #{encoder_forward.1} parent=0 // pred_fallthru
    _
  // Predicated region
  $region26: #{encoder_forward.1} parent=0 // pred_check
    _
  $region27: #{encoder_forward.1} parent=0 // pred_check_branch
    %32 = sbr.rel (0) target = $region29
  $region28: #{encoder_forward.1} parent=0 // pred_region
    _
  $region29: #{encoder_forward.1} parent=0 // pred_fallthru
    _
  // Predicated region
  $region30: #{encoder_forward.1} parent=0 // pred_check
    _
  $region31: #{encoder_forward.1} parent=0 // pred_check_branch
    %34 = sbr.rel (0) target = $region33
  $region32: #{encoder_forward.1} parent=0 // pred_region
    _
  $region33: #{encoder_forward.1} parent=0 // pred_fallthru
    _
  // Predicated region
  $region34: #{encoder_forward.1} parent=0 // pred_check
    _
  $region35: #{encoder_forward.1} parent=0 // pred_check_branch
    %36 = sbr.rel (0) target = $region37
  $region36: #{encoder_forward.1} parent=0 // pred_region
    _
  $region37: #{encoder_forward.1} parent=0 // pred_fallthru
    _
  // Predicated region
  $region38: #{encoder_forward.1} parent=0 // pred_check
    _
  $region39: #{encoder_forward.1} parent=0 // pred_check_branch
    %38 = sbr.rel (0) target = $region41
  $region40: #{encoder_forward.1} parent=0 // pred_region
    _
  $region41: #{encoder_forward.1} parent=0 // pred_fallthru
    _
  // Predicated region
  $region42: #{encoder_forward.1} parent=0 // pred_check
    _
  $region43: #{encoder_forward.1} parent=0 // pred_check_branch
    %40 = sbr.rel (0) target = $region45
  $region44: #{encoder_forward.1} parent=0 // pred_region
    _
  $region45: #{encoder_forward.1} parent=0 // pred_fallthru
    _
  // Predicated region
  $region46: #{encoder_forward.1} parent=0 // pred_check
    _
  $region47: #{encoder_forward.1} parent=0 // pred_check_branch
    %42 = sbr.rel (0) target = $region49
  $region48: #{encoder_forward.1} parent=0 // pred_region
    _
  $region49: #{encoder_forward.1} parent=0 // pred_fallthru
    _
  // Predicated region
  $region50: #{encoder_forward.1} parent=0 // pred_check
    _
  $region51: #{encoder_forward.1} parent=0 // pred_check_branch
    %44 = sbr.rel (0) target = $region53
  $region52: #{encoder_forward.1} parent=0 // pred_region
    _
  $region53: #{encoder_forward.1} parent=0 // pred_fallthru
    _
  // Predicated region
  $region54: #{encoder_forward.1} parent=0 // pred_check
    _
  $region55: #{encoder_forward.1} parent=0 // pred_check_branch
    %46 = sbr.rel (0) target = $region57
  $region56: #{encoder_forward.1} parent=0 // pred_region
    _
  $region57: #{encoder_forward.1} parent=0 // pred_fallthru
    _
  %v47 = vld [vmem:[%s13] sm:$0x1]
  %v48 = vld [vmem:[%s13 + $0x1] sm:$0x1]
  %v49 = vld [vmem:[%s13 + $0x2] sm:$0x1]
  %v50 = vld [vmem:[%s13 + $0x3] sm:$0x1]
  %v51 = vld [vmem:[%s0] sm:$0xff]
  %v52 = vld [vmem:[%s5] sm:$0xff]
  %v53 = vld [vmem:[%s5 + $0x8] sm:$0xff]
  %v54 = vld [vmem:[%s5 + $0x10] sm:$0xff]
  %v55 = vld [vmem:[%s5 + $0x18] sm:$0xff]
  %v56 = vperm.slane %v47, 0
  %vm57 = vcmask 261120
  %v59 = vsel %vm57, %v51, 0
  %61 = vmatpush.msra.mxu0 0.0
  %62 = vmatpush.msra.mxu0 0.0
  %63 = vmatpush.msra.mxu0 0.0
  %64 = vmatpush.msra.mxu0 0.0
  %65 = vmatpush.msra.mxu0 0.0
  %66 = vmatpush.msra.mxu0 0.0
  %67 = vmatpush.msra.mxu0 0.0
  %68 = vmatpush.msra.mxu0 0.0
  %69 = vmatpush.msra.mxu0 0.0
  %70 = vmatpush.msra.mxu0 0.0
  %71 = vmatpush.msra.mxu0 0.0
  %72 = vmatpush.msra.mxu0 0.0
  %73 = vmatpush.msra.mxu0 %v55
  %74 = vmatpush.msra.mxu0 %v54
  %75 = vmatpush.msra.mxu0 %v53
  %76 = vmatpush.msra.mxu0 %v52
  %77 = vmatmul.f32.gmra.mxu0 %v59
  %v78 = vpop.f32.mrf.mxu0
  %v79 = vadd.f32 %v56, %v78
  %80 = vdwg.mxu0
  %v81 = vmax.f32 %v79, 0.0
  %v82 = vld [vmem:[%s6] sm:$0xff]
  %v83 = vld [vmem:[%s6 + $0x8] sm:$0xff]
  %v84 = vld [vmem:[%s6 + $0x10] sm:$0xff]
  %v85 = vld [vmem:[%s6 + $0x18] sm:$0xff]
  %v86 = vperm.slane %v48, 0
  %v88 = vsel %vm57, %v81, 0
  %90 = vmatpush.msra.mxu0 0.0
  %91 = vmatpush.msra.mxu0 0.0
  %92 = vmatpush.msra.mxu0 0.0
  %93 = vmatpush.msra.mxu0 0.0
  %94 = vmatpush.msra.mxu0 0.0
  %95 = vmatpush.msra.mxu0 0.0
  %96 = vmatpush.msra.mxu0 0.0
  %97 = vmatpush.msra.mxu0 0.0
  %98 = vmatpush.msra.mxu0 0.0
  %99 = vmatpush.msra.mxu0 0.0
  %100 = vmatpush.msra.mxu0 0.0
  %101 = vmatpush.msra.mxu0 0.0
  %102 = vmatpush.msra.mxu0 %v85
  %103 = vmatpush.msra.mxu0 %v84
  %104 = vmatpush.msra.mxu0 %v83
  %105 = vmatpush.msra.mxu0 %v82
  %106 = vmatmul.f32.gmra.mxu0 %v88
  %v107 = vpop.f32.mrf.mxu0
  %v108 = vadd.f32 %v86, %v107
  %109 = vdwg.mxu0
  %v110 = vmax.f32 %v108, 0.0
  %v111 = vld [vmem:[%s2] sm:$0xff]
  %v112 = vld [vmem:[%s2 + $0x8] sm:$0xff]
  %v113 = vld [vmem:[%s2 + $0x10] sm:$0xff]
  %v114 = vld [vmem:[%s2 + $0x18] sm:$0xff]
  %v115 = vld [vmem:[%s2 + $0x20] sm:$0xff]
  %v116 = vld [vmem:[%s2 + $0x28] sm:$0xff]
  %v117 = vld [vmem:[%s2 + $0x30] sm:$0xff]
  %v118 = vld [vmem:[%s2 + $0x38] sm:$0xff]
  %127 = vst [vmem:[#allocation1] ss:$2 sm:$0xff] %v111
  %v128 = vld.sshfl [vmem:[#allocation1] sm:$0xff pattern:$0x75316420]
  %v129 = vld.sshfl [vmem:[#allocation1 + $0x8] sm:$0xff pattern:$0x75316420]
  %s130 = scalar_lea.vmem [#allocation1], 16
  %131 = vst [vmem:[%s130] ss:$2 sm:$0xff] %v112
  %v132 = vld.sshfl [vmem:[#allocation1 + $0x10] sm:$0xff pattern:$0x75316420]
  %v133 = vld.sshfl [vmem:[#allocation1 + $0x18] sm:$0xff pattern:$0x75316420]
  %s134 = scalar_lea.vmem [#allocation1], 32
  %135 = vst [vmem:[%s134] ss:$2 sm:$0xff] %v113
  %v136 = vld.sshfl [vmem:[#allocation1 + $0x20] sm:$0xff pattern:$0x75316420]
  %v137 = vld.sshfl [vmem:[#allocation1 + $0x28] sm:$0xff pattern:$0x75316420]
  %s138 = scalar_lea.vmem [#allocation1], 48
  %139 = vst [vmem:[%s138] ss:$2 sm:$0xff] %v114
  %v140 = vld.sshfl [vmem:[#allocation1 + $0x30] sm:$0xff pattern:$0x75316420]
  %v141 = vld.sshfl [vmem:[#allocation1 + $0x38] sm:$0xff pattern:$0x75316420]
  %142 = vst [vmem:[#allocation1] ss:$2 sm:$0xff] %v115
  %v143 = vld.sshfl [vmem:[#allocation1] sm:$0xff pattern:$0x75316420]
  %v144 = vld.sshfl [vmem:[#allocation1 + $0x8] sm:$0xff pattern:$0x75316420]
  %145 = vst [vmem:[%s130] ss:$2 sm:$0xff] %v116
  %v146 = vld.sshfl [vmem:[#allocation1 + $0x10] sm:$0xff pattern:$0x75316420]
  %v147 = vld.sshfl [vmem:[#allocation1 + $0x18] sm:$0xff pattern:$0x75316420]
  %148 = vst [vmem:[%s134] ss:$2 sm:$0xff] %v117
  %v149 = vld.sshfl [vmem:[#allocation1 + $0x20] sm:$0xff pattern:$0x75316420]
  %v150 = vld.sshfl [vmem:[#allocation1 + $0x28] sm:$0xff pattern:$0x75316420]
  %151 = vst [vmem:[%s138] ss:$2 sm:$0xff] %v118
  %v152 = vld.sshfl [vmem:[#allocation1 + $0x30] sm:$0xff pattern:$0x75316420]
  %v153 = vld.sshfl [vmem:[#allocation1 + $0x38] sm:$0xff pattern:$0x75316420]
  %vm170 = vcmask 1043456
  %v171 = vsel %vm170, %v128, 0.0
  %v172 = vsel %vm170, %v129, 0.0
  %v173 = vadd.f32 %v171, %v172
  %174 = vadd.xlane.f32.xlu0 %v173
  %v175 = vpop.xlane.xlu0 %174
  %v176 = vsel %vm170, %v132, 0.0
  %v177 = vsel %vm170, %v133, 0.0
  %v178 = vadd.f32 %v176, %v177
  %179 = vadd.xlane.f32.xlu0 %v178
  %v180 = vpop.xlane.xlu0 %179
  %v181 = vsel %vm170, %v136, 0.0
  %v182 = vsel %vm170, %v137, 0.0
  %v183 = vadd.f32 %v181, %v182
  %184 = vadd.xlane.f32.xlu0 %v183
  %v185 = vpop.xlane.xlu0 %184
  %v186 = vsel %vm170, %v140, 0.0
  %v187 = vsel %vm170, %v141, 0.0
  %v188 = vadd.f32 %v186, %v187
  %189 = vadd.xlane.f32.xlu0 %v188
  %v190 = vpop.xlane.xlu0 %189
  %v191 = vsel %vm170, %v143, 0.0
  %v192 = vsel %vm170, %v144, 0.0
  %v193 = vadd.f32 %v191, %v192
  %194 = vadd.xlane.f32.xlu0 %v193
  %v195 = vpop.xlane.xlu0 %194
  %v196 = vsel %vm170, %v146, 0.0
  %v197 = vsel %vm170, %v147, 0.0
  %v198 = vadd.f32 %v196, %v197
  %199 = vadd.xlane.f32.xlu0 %v198
  %v200 = vpop.xlane.xlu0 %199
  %v201 = vsel %vm170, %v149, 0.0
  %v202 = vsel %vm170, %v150, 0.0
  %v203 = vadd.f32 %v201, %v202
  %204 = vadd.xlane.f32.xlu0 %v203
  %v205 = vpop.xlane.xlu0 %204
  %v206 = vsel %vm170, %v152, 0.0
  %v207 = vsel %vm170, %v153, 0.0
  %v208 = vadd.f32 %v206, %v207
  %209 = vadd.xlane.f32.xlu0 %v208
  %v210 = vpop.xlane.xlu0 %209
  %v211 = vmul.f32 %v175, 0.00390625
  %v212 = vmul.f32 %v180, 0.00390625
  %v213 = vmul.f32 %v185, 0.00390625
  %v214 = vmul.f32 %v190, 0.00390625
  %v215 = vmul.f32 %v195, 0.00390625
  %v216 = vmul.f32 %v200, 0.00390625
  %v217 = vmul.f32 %v205, 0.00390625
  %v218 = vmul.f32 %v210, 0.00390625
  %v219 = vld [vmem:[%s3] sm:$0xff]
  %v220 = vld [vmem:[%s3 + $0x8] sm:$0xff]
  %v221 = vld [vmem:[%s3 + $0x10] sm:$0xff]
  %v222 = vld [vmem:[%s3 + $0x18] sm:$0xff]
  %v223 = vld [vmem:[%s3 + $0x20] sm:$0xff]
  %v224 = vld [vmem:[%s3 + $0x28] sm:$0xff]
  %v225 = vld [vmem:[%s3 + $0x30] sm:$0xff]
  %v226 = vld [vmem:[%s3 + $0x38] sm:$0xff]
  %235 = vst [vmem:[#allocation1] ss:$2 sm:$0xff] %v219
  %v236 = vld.sshfl [vmem:[#allocation1] sm:$0xff pattern:$0x75316420]
  %v237 = vld.sshfl [vmem:[#allocation1 + $0x8] sm:$0xff pattern:$0x75316420]
  %s238 = scalar_lea.vmem [#allocation1], 16
  %239 = vst [vmem:[%s238] ss:$2 sm:$0xff] %v220
  %v240 = vld.sshfl [vmem:[#allocation1 + $0x10] sm:$0xff pattern:$0x75316420]
  %v241 = vld.sshfl [vmem:[#allocation1 + $0x18] sm:$0xff pattern:$0x75316420]
  %s242 = scalar_lea.vmem [#allocation1], 32
  %243 = vst [vmem:[%s242] ss:$2 sm:$0xff] %v221
  %v244 = vld.sshfl [vmem:[#allocation1 + $0x20] sm:$0xff pattern:$0x75316420]
  %v245 = vld.sshfl [vmem:[#allocation1 + $0x28] sm:$0xff pattern:$0x75316420]
  %s246 = scalar_lea.vmem [#allocation1], 48
  %247 = vst [vmem:[%s246] ss:$2 sm:$0xff] %v222
  %v248 = vld.sshfl [vmem:[#allocation1 + $0x30] sm:$0xff pattern:$0x75316420]
  %v249 = vld.sshfl [vmem:[#allocation1 + $0x38] sm:$0xff pattern:$0x75316420]
  %250 = vst [vmem:[#allocation1] ss:$2 sm:$0xff] %v223
  %v251 = vld.sshfl [vmem:[#allocation1] sm:$0xff pattern:$0x75316420]
  %v252 = vld.sshfl [vmem:[#allocation1 + $0x8] sm:$0xff pattern:$0x75316420]
  %253 = vst [vmem:[%s238] ss:$2 sm:$0xff] %v224
  %v254 = vld.sshfl [vmem:[#allocation1 + $0x10] sm:$0xff pattern:$0x75316420]
  %v255 = vld.sshfl [vmem:[#allocation1 + $0x18] sm:$0xff pattern:$0x75316420]
  %256 = vst [vmem:[%s242] ss:$2 sm:$0xff] %v225
  %v257 = vld.sshfl [vmem:[#allocation1 + $0x20] sm:$0xff pattern:$0x75316420]
  %v258 = vld.sshfl [vmem:[#allocation1 + $0x28] sm:$0xff pattern:$0x75316420]
  %259 = vst [vmem:[%s246] ss:$2 sm:$0xff] %v226
  %v260 = vld.sshfl [vmem:[#allocation1 + $0x30] sm:$0xff pattern:$0x75316420]
  %v261 = vld.sshfl [vmem:[#allocation1 + $0x38] sm:$0xff pattern:$0x75316420]
  %v278 = vsel %vm170, %v236, 0.0
  %v279 = vsel %vm170, %v237, 0.0
  %v280 = vadd.f32 %v278, %v279
  %281 = vadd.xlane.f32.xlu0 %v280
  %v282 = vpop.xlane.xlu0 %281
  %v283 = vsel %vm170, %v240, 0.0
  %v284 = vsel %vm170, %v241, 0.0
  %v285 = vadd.f32 %v283, %v284
  %286 = vadd.xlane.f32.xlu0 %v285
  %v287 = vpop.xlane.xlu0 %286
  %v288 = vsel %vm170, %v244, 0.0
  %v289 = vsel %vm170, %v245, 0.0
  %v290 = vadd.f32 %v288, %v289
  %291 = vadd.xlane.f32.xlu0 %v290
  %v292 = vpop.xlane.xlu0 %291
  %v293 = vsel %vm170, %v248, 0.0
  %v294 = vsel %vm170, %v249, 0.0
  %v295 = vadd.f32 %v293, %v294
  %296 = vadd.xlane.f32.xlu0 %v295
  %v297 = vpop.xlane.xlu0 %296
  %v298 = vsel %vm170, %v251, 0.0
  %v299 = vsel %vm170, %v252, 0.0
  %v300 = vadd.f32 %v298, %v299
  %301 = vadd.xlane.f32.xlu0 %v300
  %v302 = vpop.xlane.xlu0 %301
  %v303 = vsel %vm170, %v254, 0.0
  %v304 = vsel %vm170, %v255, 0.0
  %v305 = vadd.f32 %v303, %v304
  %306 = vadd.xlane.f32.xlu0 %v305
  %v307 = vpop.xlane.xlu0 %306
  %v308 = vsel %vm170, %v257, 0.0
  %v309 = vsel %vm170, %v258, 0.0
  %v310 = vadd.f32 %v308, %v309
  %311 = vadd.xlane.f32.xlu0 %v310
  %v312 = vpop.xlane.xlu0 %311
  %v313 = vsel %vm170, %v260, 0.0
  %v314 = vsel %vm170, %v261, 0.0
  %v315 = vadd.f32 %v313, %v314
  %316 = vadd.xlane.f32.xlu0 %v315
  %v317 = vpop.xlane.xlu0 %316
  %v318 = vmul.f32 %v282, 0.00390625
  %v319 = vmul.f32 %v287, 0.00390625
  %v320 = vmul.f32 %v292, 0.00390625
  %v321 = vmul.f32 %v297, 0.00390625
  %v322 = vmul.f32 %v302, 0.00390625
  %v323 = vmul.f32 %v307, 0.00390625
  %v324 = vmul.f32 %v312, 0.00390625
  %v325 = vmul.f32 %v317, 0.00390625
  %v326 = vld [vmem:[%s4] sm:$0xff]
  %v327 = vld [vmem:[%s4 + $0x8] sm:$0xff]
  %v328 = vld [vmem:[%s4 + $0x10] sm:$0xff]
  %v329 = vld [vmem:[%s4 + $0x18] sm:$0xff]
  %v330 = vld [vmem:[%s4 + $0x20] sm:$0xff]
  %v331 = vld [vmem:[%s4 + $0x28] sm:$0xff]
  %v332 = vld [vmem:[%s4 + $0x30] sm:$0xff]
  %v333 = vld [vmem:[%s4 + $0x38] sm:$0xff]
  %342 = vst [vmem:[#allocation1] ss:$2 sm:$0xff] %v326
  %v343 = vld.sshfl [vmem:[#allocation1] sm:$0xff pattern:$0x75316420]
  %v344 = vld.sshfl [vmem:[#allocation1 + $0x8] sm:$0xff pattern:$0x75316420]
  %s345 = scalar_lea.vmem [#allocation1], 16
  %346 = vst [vmem:[%s345] ss:$2 sm:$0xff] %v327
  %v347 = vld.sshfl [vmem:[#allocation1 + $0x10] sm:$0xff pattern:$0x75316420]
  %v348 = vld.sshfl [vmem:[#allocation1 + $0x18] sm:$0xff pattern:$0x75316420]
  %s349 = scalar_lea.vmem [#allocation1], 32
  %350 = vst [vmem:[%s349] ss:$2 sm:$0xff] %v328
  %v351 = vld.sshfl [vmem:[#allocation1 + $0x20] sm:$0xff pattern:$0x75316420]
  %v352 = vld.sshfl [vmem:[#allocation1 + $0x28] sm:$0xff pattern:$0x75316420]
  %s353 = scalar_lea.vmem [#allocation1], 48
  %354 = vst [vmem:[%s353] ss:$2 sm:$0xff] %v329
  %v355 = vld.sshfl [vmem:[#allocation1 + $0x30] sm:$0xff pattern:$0x75316420]
  %v356 = vld.sshfl [vmem:[#allocation1 + $0x38] sm:$0xff pattern:$0x75316420]
  %357 = vst [vmem:[#allocation1] ss:$2 sm:$0xff] %v330
  %v358 = vld.sshfl [vmem:[#allocation1] sm:$0xff pattern:$0x75316420]
  %v359 = vld.sshfl [vmem:[#allocation1 + $0x8] sm:$0xff pattern:$0x75316420]
  %360 = vst [vmem:[%s345] ss:$2 sm:$0xff] %v331
  %v361 = vld.sshfl [vmem:[#allocation1 + $0x10] sm:$0xff pattern:$0x75316420]
  %v362 = vld.sshfl [vmem:[#allocation1 + $0x18] sm:$0xff pattern:$0x75316420]
  %363 = vst [vmem:[%s349] ss:$2 sm:$0xff] %v332
  %v364 = vld.sshfl [vmem:[#allocation1 + $0x20] sm:$0xff pattern:$0x75316420]
  %v365 = vld.sshfl [vmem:[#allocation1 + $0x28] sm:$0xff pattern:$0x75316420]
  %366 = vst [vmem:[%s353] ss:$2 sm:$0xff] %v333
  %v367 = vld.sshfl [vmem:[#allocation1 + $0x30] sm:$0xff pattern:$0x75316420]
  %v368 = vld.sshfl [vmem:[#allocation1 + $0x38] sm:$0xff pattern:$0x75316420]
  %v385 = vsel %vm170, %v343, 0.0
  %v386 = vsel %vm170, %v344, 0.0
  %v387 = vadd.f32 %v385, %v386
  %388 = vadd.xlane.f32.xlu0 %v387
  %v389 = vpop.xlane.xlu0 %388
  %v390 = vsel %vm170, %v347, 0.0
  %v391 = vsel %vm170, %v348, 0.0
  %v392 = vadd.f32 %v390, %v391
  %393 = vadd.xlane.f32.xlu0 %v392
  %v394 = vpop.xlane.xlu0 %393
  %v395 = vsel %vm170, %v351, 0.0
  %v396 = vsel %vm170, %v352, 0.0
  %v397 = vadd.f32 %v395, %v396
  %398 = vadd.xlane.f32.xlu0 %v397
  %v399 = vpop.xlane.xlu0 %398
  %v400 = vsel %vm170, %v355, 0.0
  %v401 = vsel %vm170, %v356, 0.0
  %v402 = vadd.f32 %v400, %v401
  %403 = vadd.xlane.f32.xlu0 %v402
  %v404 = vpop.xlane.xlu0 %403
  %v405 = vsel %vm170, %v358, 0.0
  %v406 = vsel %vm170, %v359, 0.0
  %v407 = vadd.f32 %v405, %v406
  %408 = vadd.xlane.f32.xlu0 %v407
  %v409 = vpop.xlane.xlu0 %408
  %v410 = vsel %vm170, %v361, 0.0
  %v411 = vsel %vm170, %v362, 0.0
  %v412 = vadd.f32 %v410, %v411
  %413 = vadd.xlane.f32.xlu0 %v412
  %v414 = vpop.xlane.xlu0 %413
  %v415 = vsel %vm170, %v364, 0.0
  %v416 = vsel %vm170, %v365, 0.0
  %v417 = vadd.f32 %v415, %v416
  %418 = vadd.xlane.f32.xlu0 %v417
  %v419 = vpop.xlane.xlu0 %418
  %v420 = vsel %vm170, %v367, 0.0
  %v421 = vsel %vm170, %v368, 0.0
  %v422 = vadd.f32 %v420, %v421
  %423 = vadd.xlane.f32.xlu0 %v422
  %v424 = vpop.xlane.xlu0 %423
  %v425 = vmul.f32 %v389, 0.00390625
  %v426 = vmul.f32 %v394, 0.00390625
  %v427 = vmul.f32 %v399, 0.00390625
  %v428 = vmul.f32 %v404, 0.00390625
  %v429 = vmul.f32 %v409, 0.00390625
  %v430 = vmul.f32 %v414, 0.00390625
  %v431 = vmul.f32 %v419, 0.00390625
  %v432 = vmul.f32 %v424, 0.00390625
  %v433 = vld [vmem:[%s1] sm:$0xff]
  %v434 = vld [vmem:[%s7] sm:$0xff]
  %v435 = vld [vmem:[%s7 + $0x8] sm:$0xf]
  %v436 = vld [vmem:[%s8] sm:$0xf]
  %v445 = vlaneseq
  %v446 = vand.u32 %v445, 127
  %v447 = vperm.slane %v211, %v446
  %v448 = vperm.slane %v212, %v446
  %v449 = vperm.slane %v213, %v446
  %v450 = vperm.slane %v214, %v446
  %v451 = vperm.slane %v215, %v446
  %v452 = vperm.slane %v216, %v446
  %v453 = vperm.slane %v217, %v446
  %v454 = vperm.slane %v218, %v446
  %vm455 = vcmask 1041409
  %v456 = vsel %vm455, %v448, %v447
  %vm457 = vcmask 1042434
  %v458 = vsel %vm457, %v449, %v456
  %vm459 = vcmask 1043459
  %v460 = vsel %vm459, %v450, %v458
  %vm461 = vcmask 1044484
  %v462 = vsel %vm461, %v451, %v460
  %vm463 = vcmask 1045509
  %v464 = vsel %vm463, %v452, %v462
  %vm465 = vcmask 1046534
  %v466 = vsel %vm465, %v453, %v464
  %vm467 = vcmask 1047559
  %v468 = vsel %vm467, %v454, %v466
  %vm469 = vcmask 31744
  %v470 = vsel %vm469, %v468, 0
  %v473 = vsel %vm170, %v436, 0
  %475 = vmatpush.msra.mxu0 0.0
  %476 = vmatpush.msra.mxu0 0.0
  %477 = vmatpush.msra.mxu0 0.0
  %478 = vmatpush.msra.mxu0 0.0
  %479 = vmatpush.msra.mxu0 0.0
  %480 = vmatpush.msra.mxu0 0.0
  %481 = vmatpush.msra.mxu0 0.0
  %482 = vmatpush.msra.mxu0 0.0
  %483 = vmatpush.msra.mxu0 0.0
  %484 = vmatpush.msra.mxu0 0.0
  %485 = vmatpush.msra.mxu0 0.0
  %486 = vmatpush.msra.mxu0 0.0
  %487 = vmatpush.msra.mxu0 0.0
  %488 = vmatpush.msra.mxu0 0.0
  %489 = vmatpush.msra.mxu0 0.0
  %490 = vmatpush.msra.mxu0 %v473
  %491 = vmatmul.f32.gmra.mxu0 %v470
  %v492 = vpop.f32.mrf.mxu0
  %v493 = vadd.f32 0.0, %v492
  %494 = vdwg.mxu0
  %vm495 = vcmask 97280
  %v497 = vsel %vm495, %v433, 0
  %v500 = vsel %vm170, %v435, 0
  %502 = vmatpush.msra.mxu0 0.0
  %503 = vmatpush.msra.mxu0 0.0
  %504 = vmatpush.msra.mxu0 0.0
  %505 = vmatpush.msra.mxu0 0.0
  %506 = vmatpush.msra.mxu0 0.0
  %507 = vmatpush.msra.mxu0 0.0
  %508 = vmatpush.msra.mxu0 0.0
  %509 = vmatpush.msra.mxu0 0.0
  %510 = vmatpush.msra.mxu0 0.0
  %511 = vmatpush.msra.mxu0 0.0
  %512 = vmatpush.msra.mxu0 0.0
  %513 = vmatpush.msra.mxu0 0.0
  %514 = vmatpush.msra.mxu0 0.0
  %515 = vmatpush.msra.mxu0 0.0
  %516 = vmatpush.msra.mxu0 %v500
  %517 = vmatpush.msra.mxu0 %v434
  %518 = vmatmul.f32.gmra.mxu0 %v497
  %v519 = vpop.f32.mrf.mxu0
  %v520 = vadd.f32 %v493, %v519
  %521 = vdwg.mxu0
  %v522 = vld [vmem:[%s9] sm:$0xf]
  %v531 = vperm.slane %v318, %v446
  %v532 = vperm.slane %v319, %v446
  %v533 = vperm.slane %v320, %v446
  %v534 = vperm.slane %v321, %v446
  %v535 = vperm.slane %v322, %v446
  %v536 = vperm.slane %v323, %v446
  %v537 = vperm.slane %v324, %v446
  %v538 = vperm.slane %v325, %v446
  %v539 = vsel %vm455, %v532, %v531
  %v540 = vsel %vm457, %v533, %v539
  %v541 = vsel %vm459, %v534, %v540
  %v542 = vsel %vm461, %v535, %v541
  %v543 = vsel %vm463, %v536, %v542
  %v544 = vsel %vm465, %v537, %v543
  %v545 = vsel %vm467, %v538, %v544
  %v546 = vsel %vm469, %v545, 0
  %v549 = vsel %vm170, %v522, 0
  %551 = vmatpush.msra.mxu0 0.0
  %552 = vmatpush.msra.mxu0 0.0
  %553 = vmatpush.msra.mxu0 0.0
  %554 = vmatpush.msra.mxu0 0.0
  %555 = vmatpush.msra.mxu0 0.0
  %556 = vmatpush.msra.mxu0 0.0
  %557 = vmatpush.msra.mxu0 0.0
  %558 = vmatpush.msra.mxu0 0.0
  %559 = vmatpush.msra.mxu0 0.0
  %560 = vmatpush.msra.mxu0 0.0
  %561 = vmatpush.msra.mxu0 0.0
  %562 = vmatpush.msra.mxu0 0.0
  %563 = vmatpush.msra.mxu0 0.0
  %564 = vmatpush.msra.mxu0 0.0
  %565 = vmatpush.msra.mxu0 0.0
  %566 = vmatpush.msra.mxu0 %v549
  %567 = vmatmul.f32.gmra.mxu0 %v546
  %v568 = vpop.f32.mrf.mxu0
  %v569 = vadd.f32 0.0, %v568
  %570 = vdwg.mxu0
  %v571 = vadd.f32 %v520, %v569
  %v572 = vld [vmem:[%s10] sm:$0xf]
  %v581 = vperm.slane %v425, %v446
  %v582 = vperm.slane %v426, %v446
  %v583 = vperm.slane %v427, %v446
  %v584 = vperm.slane %v428, %v446
  %v585 = vperm.slane %v429, %v446
  %v586 = vperm.slane %v430, %v446
  %v587 = vperm.slane %v431, %v446
  %v588 = vperm.slane %v432, %v446
  %v589 = vsel %vm455, %v582, %v581
  %v590 = vsel %vm457, %v583, %v589
  %v591 = vsel %vm459, %v584, %v590
  %v592 = vsel %vm461, %v585, %v591
  %v593 = vsel %vm463, %v586, %v592
  %v594 = vsel %vm465, %v587, %v593
  %v595 = vsel %vm467, %v588, %v594
  %v596 = vsel %vm469, %v595, 0
  %v599 = vsel %vm170, %v572, 0
  %601 = vmatpush.msra.mxu0 0.0
  %602 = vmatpush.msra.mxu0 0.0
  %603 = vmatpush.msra.mxu0 0.0
  %604 = vmatpush.msra.mxu0 0.0
  %605 = vmatpush.msra.mxu0 0.0
  %606 = vmatpush.msra.mxu0 0.0
  %607 = vmatpush.msra.mxu0 0.0
  %608 = vmatpush.msra.mxu0 0.0
  %609 = vmatpush.msra.mxu0 0.0
  %610 = vmatpush.msra.mxu0 0.0
  %611 = vmatpush.msra.mxu0 0.0
  %612 = vmatpush.msra.mxu0 0.0
  %613 = vmatpush.msra.mxu0 0.0
  %614 = vmatpush.msra.mxu0 0.0
  %615 = vmatpush.msra.mxu0 0.0
  %616 = vmatpush.msra.mxu0 %v599
  %617 = vmatmul.f32.gmra.mxu0 %v596
  %v618 = vpop.f32.mrf.mxu0
  %v619 = vadd.f32 0.0, %v618
  %620 = vdwg.mxu0
  %v621 = vadd.f32 %v571, %v619
  %v622 = vperm.slane %v49, 0
  %v623 = vadd.f32 %v621, %v622
  %v624 = vmax.f32 %v623, 0.0
  %v625 = vld [vmem:[%s11] sm:$0xff]
  %v626 = vld [vmem:[%s11 + $0x8] sm:$0xff]
  %v627 = vld [vmem:[%s11 + $0x10] sm:$0xff]
  %v628 = vld [vmem:[%s11 + $0x18] sm:$0xff]
  %v629 = vld [vmem:[%s12] sm:$0xff]
  %v630 = vld [vmem:[%s12 + $0x8] sm:$0xff]
  %v631 = vld [vmem:[%s12 + $0x10] sm:$0xff]
  %v632 = vld [vmem:[%s12 + $0x18] sm:$0xff]
  %v634 = vsel %vm57, %v624, 0
  %636 = vmatpush.msra.mxu0 0.0
  %637 = vmatpush.msra.mxu0 0.0
  %638 = vmatpush.msra.mxu0 0.0
  %639 = vmatpush.msra.mxu0 0.0
  %640 = vmatpush.msra.mxu0 0.0
  %641 = vmatpush.msra.mxu0 0.0
  %642 = vmatpush.msra.mxu0 0.0
  %643 = vmatpush.msra.mxu0 0.0
  %644 = vmatpush.msra.mxu0 0.0
  %645 = vmatpush.msra.mxu0 0.0
  %646 = vmatpush.msra.mxu0 0.0
  %647 = vmatpush.msra.mxu0 0.0
  %648 = vmatpush.msra.mxu0 %v632
  %649 = vmatpush.msra.mxu0 %v631
  %650 = vmatpush.msra.mxu0 %v630
  %651 = vmatpush.msra.mxu0 %v629
  %652 = vmatmul.f32.gmra.mxu0 %v634
  %v653 = vpop.f32.mrf.mxu0
  %v654 = vadd.f32 0.0, %v653
  %655 = vdwg.mxu0
  %v657 = vsel %vm57, %v110, 0
  %659 = vmatpush.msra.mxu0 0.0
  %660 = vmatpush.msra.mxu0 0.0
  %661 = vmatpush.msra.mxu0 0.0
  %662 = vmatpush.msra.mxu0 0.0
  %663 = vmatpush.msra.mxu0 0.0
  %664 = vmatpush.msra.mxu0 0.0
  %665 = vmatpush.msra.mxu0 0.0
  %666 = vmatpush.msra.mxu0 0.0
  %667 = vmatpush.msra.mxu0 0.0
  %668 = vmatpush.msra.mxu0 0.0
  %669 = vmatpush.msra.mxu0 0.0
  %670 = vmatpush.msra.mxu0 0.0
  %671 = vmatpush.msra.mxu0 %v628
  %672 = vmatpush.msra.mxu0 %v627
  %673 = vmatpush.msra.mxu0 %v626
  %674 = vmatpush.msra.mxu0 %v625
  %675 = vmatmul.f32.gmra.mxu0 %v657
  %v676 = vpop.f32.mrf.mxu0
  %v677 = vadd.f32 %v654, %v676
  %678 = vdwg.mxu0
  %v679 = vperm.slane %v50, 0
  %v680 = vadd.f32 %v677, %v679
  %681 = vst.msk [vmem:[%s14] sm:$0xff] %vm57, %v680
  // Predicated region
  $region58: #{encoder_forward.1} parent=0 // pred_check
    _
  $region59: #{encoder_forward.1} parent=0 // pred_check_branch
    %683 = sbr.rel (0) target = $region61
  $region60: #{encoder_forward.1} parent=0 // pred_region
    _
  $region61: #{encoder_forward.1} parent=0 // pred_fallthru
    _
  // Predicated region
  $region62: #{encoder_forward.1} parent=0 // pred_check
    _
  $region63: #{encoder_forward.1} parent=0 // pred_check_branch
    %685 = sbr.rel (0) target = $region65
  $region64: #{encoder_forward.1} parent=0 // pred_region
    _
  $region65: #{encoder_forward.1} parent=0 // pred_fallthru
    _

</llo_original>
